<compile_context>
chip_gen: v5e
topology: v5e:2x2
jax: 0.10.0
libtpu: 0.0.40
codegen_flags: <defaults>
</compile_context>

<pallas_src>
import math

import jax
import jax.numpy as jnp
import numpy as np
from jax.experimental import pallas as pl
from jax.experimental.pallas import tpu as pltpu


def _round_up(x: int, m: int) -> int:
    return ((x + m - 1) // m) * m


def _biclass_kernel(n_t_ref, transf_t_ref, v_ref, out_ref):
    # n_t_ref      : (Pp,  CONp) bf16   == n^T      (zero-padded, per call)
    # transf_t_ref : (CONp, DBp) bf16   == transf^T (zero-padded, cached)
    # v_ref        : (DBp,  Mp ) bf16
    # out_ref      : (Pp,   Mp ) f32
    #
    # W = n^T @ transf^T : (Pp, CONp) @ (CONp, DBp) -> (Pp, DBp); 1 MXU push.
    w = jnp.dot(n_t_ref[...], transf_t_ref[...],
                preferred_element_type=jnp.float32)
    # logits = W @ v : (Pp, DBp) @ (DBp, Mp) -> (Pp, Mp); 1 MXU push.
    logits = jnp.dot(w.astype(jnp.bfloat16), v_ref[...],
                     preferred_element_type=jnp.float32)
    # EUP-friendly sigmoid: exp and approximate reciprocal both issue on the
    # EUP slot; only the add uses the VALU.
    e = jnp.exp(-logits)
    out_ref[...] = pl.reciprocal(1.0 + e, approx=True).astype(out_ref.dtype)


def prepare_transf(transf):
    """One-time weight layout work, hoisted out of the per-call path.

    transf: (db_dim, con_dim) f32  ->  padded transf^T as (CONp, DBp) bf16.
    """
    db_dim, con_dim = transf.shape
    CONp = _round_up(con_dim, 128)   # contraction dim (lane dim of n^T)
    DBp = _round_up(db_dim, 128)     # lane dim of transf^T / sublane dim of v
    return (jnp.zeros((CONp, DBp), jnp.bfloat16)
            .at[:con_dim, :db_dim].set(transf.T.astype(jnp.bfloat16)))


@jax.jit
def biclass_forward(transf_t_pad, n, v):
    CONp, DBp = transf_t_pad.shape
    con_dim, P = n.shape
    db_dim, M = v.shape

    Pp = _round_up(P, 16)    # bf16 vreg packs 16 sublanes
    Mp = _round_up(M, 128)   # lane-dense output -> unmasked vst

    bf16 = jnp.bfloat16
    n_t = jnp.zeros((Pp, CONp), bf16).at[:P, :con_dim].set(n.T.astype(bf16))
    v_p = jnp.zeros((DBp, Mp), bf16).at[:db_dim, :M].set(v.astype(bf16))

    vmem = pltpu.MemorySpace.VMEM
    out_p = pl.pallas_call(
        _biclass_kernel,
        out_shape=jax.ShapeDtypeStruct((Pp, Mp), jnp.float32),
        in_specs=[pl.BlockSpec(memory_space=vmem)] * 3,
        out_specs=pl.BlockSpec(memory_space=vmem),
    )(n_t, transf_t_pad, v_p)

    # Padded rows/cols hold sigmoid(0)=0.5; slice back to the module's (P, M)
    # interface.  (Drop this slice and mask downstream if the consumer can.)
    return out_p[:P, :M]


def init_transf(key, db_dim, con_dim, gain=1.414):
    # xavier_uniform_: bound = gain * sqrt(6 / (fan_in + fan_out))
    bound = gain * math.sqrt(6.0 / (con_dim + db_dim))
    return jax.random.uniform(
        key, (db_dim, con_dim), dtype=jnp.float32, minval=-bound, maxval=bound)


def _bf16_round(x):
    return np.asarray(
        jnp.asarray(x, jnp.float32).astype(jnp.bfloat16).astype(jnp.float32))


if __name__ == "__main__":
    con_dim = 32   # word-embedding dim
    db_dim = 16    # entity-embedding dim
    P = 8          # number of entities (columns of n)
    M = 8          # number of words    (columns of v)

    key = jax.random.PRNGKey(0)
    k_t, k_n, k_v = jax.random.split(key, 3)

    transf = init_transf(k_t, db_dim, con_dim)
    n = jax.random.normal(k_n, (con_dim, P), dtype=jnp.float32)
    v = jax.random.normal(k_v, (db_dim, M), dtype=jnp.float32)

    # Weight layout work done once and reused across calls.
    transf_t_pad = jax.block_until_ready(prepare_transf(transf))

    out = jax.block_until_ready(biclass_forward(transf_t_pad, n, v))
    assert out.shape == (P, M)

    # Host reference mimicking the kernel's rounding points
    # (bf16 operands, f32 accumulation, reassociated chain).
    nb = _bf16_round(np.asarray(n).T)          # (P, con_dim)
    tb = _bf16_round(np.asarray(transf).T)     # (con_dim, db_dim)
    wb = _bf16_round(nb @ tb)                  # (P, db_dim)
    vb = _bf16_round(np.asarray(v))            # (db_dim, M)
    logits = wb @ vb
    ref = 1.0 / (1.0 + np.exp(-logits))
    np.testing.assert_allclose(np.asarray(out), ref, rtol=2e-2, atol=2e-2)

    print("KERNEL_OK")
</pallas_src>

<mosaic_0001>
module attributes {stable_mosaic.version = 11 : i64} {
  func.func @_biclass_kernel(%arg0: memref<16x128xbf16, #tpu.memory_space<vmem>>, %arg1: memref<128x128xbf16, #tpu.memory_space<vmem>>, %arg2: memref<128x128xbf16, #tpu.memory_space<vmem>>, %arg3: memref<16x128xf32, #tpu.memory_space<vmem>>) attributes {dimension_semantics = [], scalar_prefetch = 0 : i64, scratch_operands = 0 : i64, tpu.core_type = #tpu.core_type<tc>} {
    %c0 = arith.constant 0 : index
    %c0_0 = arith.constant 0 : index
    %0 = vector.load %arg0[%c0, %c0_0] : memref<16x128xbf16, #tpu.memory_space<vmem>>, vector<16x128xbf16>
    %c0_1 = arith.constant 0 : index
    %c0_2 = arith.constant 0 : index
    %1 = vector.load %arg1[%c0_1, %c0_2] : memref<128x128xbf16, #tpu.memory_space<vmem>>, vector<128x128xbf16>
    %cst = arith.constant dense<0.000000e+00> : vector<16x128xf32>
    %2 = tpu.matmul %0, %1, %cst {dimension_numbers = #tpu.dot_dimension_numbers<[1], [0], [0], [1], [0, 0, 1, 1], [], []>} : vector<16x128xbf16>, vector<128x128xbf16>, vector<16x128xf32> -> vector<16x128xf32>
    %3 = arith.truncf %2 : vector<16x128xf32> to vector<16x128xbf16>
    %c0_3 = arith.constant 0 : index
    %c0_4 = arith.constant 0 : index
    %4 = vector.load %arg2[%c0_3, %c0_4] : memref<128x128xbf16, #tpu.memory_space<vmem>>, vector<128x128xbf16>
    %cst_5 = arith.constant dense<0.000000e+00> : vector<16x128xf32>
    %5 = tpu.matmul %3, %4, %cst_5 {dimension_numbers = #tpu.dot_dimension_numbers<[1], [0], [0], [1], [0, 0, 1, 1], [], []>} : vector<16x128xbf16>, vector<128x128xbf16>, vector<16x128xf32> -> vector<16x128xf32>
    %cst_6 = arith.constant 0.000000e+00 : f32
    %6 = vector.broadcast %cst_6 : f32 to vector<16x128xf32>
    %7 = arith.subf %6, %5 : vector<16x128xf32>
    %8 = math.exp %7 : vector<16x128xf32>
    %cst_7 = arith.constant 1.000000e+00 : f32
    %9 = vector.broadcast %cst_7 : f32 to vector<16x128xf32>
    %10 = arith.addf %9, %8 : vector<16x128xf32>
    %11 = tpu.reciprocal %10 {approx = true} : vector<16x128xf32> -> vector<16x128xf32>
    %c0_8 = arith.constant 0 : index
    %c0_9 = arith.constant 0 : index
    %12 = vector.load %arg3[%c0_8, %c0_9] : memref<16x128xf32, #tpu.memory_space<vmem>>, vector<16x128xf32>
    tpu.vector_store %arg3[%c0_8, %c0_9], %11 {strides = array<i32>} : memref<16x128xf32, #tpu.memory_space<vmem>>, vector<16x128xf32>,
    return
  }
}

</mosaic_0001>

<llo_original>
// kernel: biclass_forward.1
$region0: #{biclass_forward.1}
  #allocation0 [shape = 'u32[]', space=smem, size = 0x4, offset = 0x4, fixed_abs, tag = 'smem constant byte address 0x4 - core index']
  #allocation1 [shape = 'u32[72,128]{1,0:T(1,128)}', space=vmem, size = 0x9000, scoped, tag = 'internal scratch']
  %s0 = inlined_call_operand.vmem [shape: bf16[16,128], index: 0, kind: input, shape index: {}]
  %s1 = inlined_call_operand.vmem [shape: bf16[128,128], index: 1, kind: input, shape index: {}]
  %s2 = inlined_call_operand.vmem [shape: bf16[128,128], index: 2, kind: input, shape index: {}]
  %s3 = inlined_call_operand.vmem [shape: f32[16,128], index: 3, kind: output, shape index: {}]
  %s4 = sld [smem:[#allocation0]]
  $region22: #{biclass_forward.1} parent=0
    _
  %s6 = ssub.s32 1, %s4
  %s7 = scalar_select 0, %s6, %s4
  // Predicated region
  $region2: #{biclass_forward.1} parent=0 // pred_check
    _
  $region3: #{biclass_forward.1} parent=0 // pred_check_branch
    %9 = sbr.rel (0) target = $region5
  $region4: #{biclass_forward.1} parent=0 // pred_region
    _
  $region5: #{biclass_forward.1} parent=0 // pred_fallthru
    _
  // Predicated region
  $region6: #{biclass_forward.1} parent=0 // pred_check
    _
  $region7: #{biclass_forward.1} parent=0 // pred_check_branch
    %11 = sbr.rel (0) target = $region9
  $region8: #{biclass_forward.1} parent=0 // pred_region
    _
  $region9: #{biclass_forward.1} parent=0 // pred_fallthru
    _
  // Predicated region
  $region10: #{biclass_forward.1} parent=0 // pred_check
    _
  $region11: #{biclass_forward.1} parent=0 // pred_check_branch
    %13 = sbr.rel (0) target = $region13
  $region12: #{biclass_forward.1} parent=0 // pred_region
    _
  $region13: #{biclass_forward.1} parent=0 // pred_fallthru
    _
  %v14 = vld [vmem:[%s0] sm:$0xf]
  %v15 = vld [vmem:[%s0 + $0x4] sm:$0xf]
  %v16 = vld [vmem:[%s1] sm:$0xf]
  %v17 = vld [vmem:[%s1 + $0x4] sm:$0xf]
  %v18 = vld [vmem:[%s1 + $0x8] sm:$0xf]
  %v19 = vld [vmem:[%s1 + $0xc] sm:$0xf]
  %v20 = vld [vmem:[%s1 + $0x10] sm:$0xf]
  %v21 = vld [vmem:[%s1 + $0x14] sm:$0xf]
  %v22 = vld [vmem:[%s1 + $0x18] sm:$0xf]
  %v23 = vld [vmem:[%s1 + $0x1c] sm:$0xf]
  %v24 = vld [vmem:[%s1 + $0x20] sm:$0xf]
  %v25 = vld [vmem:[%s1 + $0x24] sm:$0xf]
  %v26 = vld [vmem:[%s1 + $0x28] sm:$0xf]
  %v27 = vld [vmem:[%s1 + $0x2c] sm:$0xf]
  %v28 = vld [vmem:[%s1 + $0x30] sm:$0xf]
  %v29 = vld [vmem:[%s1 + $0x34] sm:$0xf]
  %v30 = vld [vmem:[%s1 + $0x38] sm:$0xf]
  %v31 = vld [vmem:[%s1 + $0x3c] sm:$0xf]
  %v34 = vunpack.c.l.b16 %v14
  %v35 = vunpack.c.l.b16 %v15
  %v36 = vpack.c.b16 %v35, %v34
  %v54 = vunpack.c.l.b16 %v16
  %v55 = vunpack.c.l.b16 %v17
  %v56 = vunpack.c.l.b16 %v18
  %v57 = vunpack.c.l.b16 %v19
  %v58 = vunpack.c.l.b16 %v20
  %v59 = vunpack.c.l.b16 %v21
  %v60 = vunpack.c.l.b16 %v22
  %v61 = vunpack.c.l.b16 %v23
  %v62 = vunpack.c.l.b16 %v24
  %v63 = vunpack.c.l.b16 %v25
  %v64 = vunpack.c.l.b16 %v26
  %v65 = vunpack.c.l.b16 %v27
  %v66 = vunpack.c.l.b16 %v28
  %v67 = vunpack.c.l.b16 %v29
  %v68 = vunpack.c.l.b16 %v30
  %v69 = vunpack.c.l.b16 %v31
  %v70 = vpack.c.b16 %v55, %v54
  %v71 = vpack.c.b16 %v57, %v56
  %v72 = vpack.c.b16 %v59, %v58
  %v73 = vpack.c.b16 %v61, %v60
  %v74 = vpack.c.b16 %v63, %v62
  %v75 = vpack.c.b16 %v65, %v64
  %v76 = vpack.c.b16 %v67, %v66
  %v77 = vpack.c.b16 %v69, %v68
  %86 = vmatpush.bf16.msra.mxu0 %v77
  %87 = vmatpush.bf16.msra.mxu0 %v76
  %88 = vmatpush.bf16.msra.mxu0 %v75
  %89 = vmatpush.bf16.msra.mxu0 %v74
  %90 = vmatpush.bf16.msra.mxu0 %v73
  %91 = vmatpush.bf16.msra.mxu0 %v72
  %92 = vmatpush.bf16.msra.mxu0 %v71
  %93 = vmatpush.bf16.msra.mxu0 %v70
  %94 = vmatmul.bf16.gmra.mxu0 %v36
  %v95 = vpop.f32.mrf.mxu0
  %v96 = vadd.f32 0.0, %v95
  %v97 = vpop.f32.mrf.mxu0
  %v98 = vadd.f32 0.0, %v97
  %99 = vdwg.mxu0
  %v100 = vpack.c.bf16 %v98, %v96
  %v101 = vld [vmem:[%s2] sm:$0xf]
  %v102 = vld [vmem:[%s2 + $0x4] sm:$0xf]
  %v103 = vld [vmem:[%s2 + $0x8] sm:$0xf]
  %v104 = vld [vmem:[%s2 + $0xc] sm:$0xf]
  %v105 = vld [vmem:[%s2 + $0x10] sm:$0xf]
  %v106 = vld [vmem:[%s2 + $0x14] sm:$0xf]
  %v107 = vld [vmem:[%s2 + $0x18] sm:$0xf]
  %v108 = vld [vmem:[%s2 + $0x1c] sm:$0xf]
  %v109 = vld [vmem:[%s2 + $0x20] sm:$0xf]
  %v110 = vld [vmem:[%s2 + $0x24] sm:$0xf]
  %v111 = vld [vmem:[%s2 + $0x28] sm:$0xf]
  %v112 = vld [vmem:[%s2 + $0x2c] sm:$0xf]
  %v113 = vld [vmem:[%s2 + $0x30] sm:$0xf]
  %v114 = vld [vmem:[%s2 + $0x34] sm:$0xf]
  %v115 = vld [vmem:[%s2 + $0x38] sm:$0xf]
  %v116 = vld [vmem:[%s2 + $0x3c] sm:$0xf]
  %v133 = vunpack.c.l.b16 %v101
  %v134 = vunpack.c.l.b16 %v102
  %v135 = vunpack.c.l.b16 %v103
  %v136 = vunpack.c.l.b16 %v104
  %v137 = vunpack.c.l.b16 %v105
  %v138 = vunpack.c.l.b16 %v106
  %v139 = vunpack.c.l.b16 %v107
  %v140 = vunpack.c.l.b16 %v108
  %v141 = vunpack.c.l.b16 %v109
  %v142 = vunpack.c.l.b16 %v110
  %v143 = vunpack.c.l.b16 %v111
  %v144 = vunpack.c.l.b16 %v112
  %v145 = vunpack.c.l.b16 %v113
  %v146 = vunpack.c.l.b16 %v114
  %v147 = vunpack.c.l.b16 %v115
  %v148 = vunpack.c.l.b16 %v116
  %v149 = vpack.c.b16 %v134, %v133
  %v150 = vpack.c.b16 %v136, %v135
  %v151 = vpack.c.b16 %v138, %v137
  %v152 = vpack.c.b16 %v140, %v139
  %v153 = vpack.c.b16 %v142, %v141
  %v154 = vpack.c.b16 %v144, %v143
  %v155 = vpack.c.b16 %v146, %v145
  %v156 = vpack.c.b16 %v148, %v147
  %165 = vmatpush.bf16.msra.mxu0 %v156
  %166 = vmatpush.bf16.msra.mxu0 %v155
  %167 = vmatpush.bf16.msra.mxu0 %v154
  %168 = vmatpush.bf16.msra.mxu0 %v153
  %169 = vmatpush.bf16.msra.mxu0 %v152
  %170 = vmatpush.bf16.msra.mxu0 %v151
  %171 = vmatpush.bf16.msra.mxu0 %v150
  %172 = vmatpush.bf16.msra.mxu0 %v149
  %173 = vmatmul.bf16.gmra.mxu0 %v100
  %v174 = vpop.f32.mrf.mxu0
  %v175 = vadd.f32 0.0, %v174
  %v176 = vpop.f32.mrf.mxu0
  %v177 = vadd.f32 0.0, %v176
  %178 = vdwg.mxu0
  %v179 = vsub.f32 0.0, %v175
  %v180 = vsub.f32 0.0, %v177
  %v181 = vmul.f32 %v179, 1.442695
  %v182 = vpow.pop %v181
  %v183 = vmul.f32 %v180, 1.442695
  %v184 = vpow.pop %v183
  %v185 = vadd.f32 %v182, 1.0
  %v186 = vadd.f32 %v184, 1.0
  %v187 = vrcp.pop %v185
  %v188 = vrcp.pop %v186
  %189 = vst [vmem:[%s3] sm:$0xff] %v187
  %190 = vst [vmem:[%s3 + $0x8] sm:$0xff] %v188
  // Predicated region
  $region14: #{biclass_forward.1} parent=0 // pred_check
    _
  $region15: #{biclass_forward.1} parent=0 // pred_check_branch
    %192 = sbr.rel (0) target = $region17
  $region16: #{biclass_forward.1} parent=0 // pred_region
    _
  $region17: #{biclass_forward.1} parent=0 // pred_fallthru
    _
  // Predicated region
  $region18: #{biclass_forward.1} parent=0 // pred_check
    _
  $region19: #{biclass_forward.1} parent=0 // pred_check_branch
    %194 = sbr.rel (0) target = $region21
  $region20: #{biclass_forward.1} parent=0 // pred_region
    _
  $region21: #{biclass_forward.1} parent=0 // pred_fallthru
    _

</llo_original>
